<compile_context>
chip_gen: v7x
topology: tpu7x:2x2x1
jax: 0.10.0
libtpu: 0.0.40
codegen_flags: <defaults>
</compile_context>

<pallas_src>
import functools

import jax
import jax.numpy as jnp
from jax.experimental import pallas as pl
from jax.experimental.pallas import tpu as pltpu


def _compl_mul_kernel(x_ref, w_ref, o_ref, *, B, Cout):
    # x_ref: (TM, 2B, Cin)   rows 0..B-1 = Re(x_ft), rows B..2B-1 = Im(x_ft)
    # w_ref: (TM, Cin, 2Cout) lanes 0..Cout-1 = Re(w), lanes Cout..2Cout-1 = Im(w)
    # o_ref: (TM, B, 2Cout)   lanes 0..Cout-1 = Re(out), lanes Cout..2Cout-1 = Im(out)
    x = x_ref[...]
    w = w_ref[...]
    # One fused MXU matmul per mode: (2B, Cin) @ (Cin, 2Cout), f32 accumulation.
    y = jnp.einsum("mri,mic->mrc", x, w, preferred_element_type=jnp.float32)
    rr = y[:, :B, :Cout]   # xr @ wr
    ri = y[:, :B, Cout:]   # xr @ wi
    ir = y[:, B:, :Cout]   # xi @ wr
    ii = y[:, B:, Cout:]   # xi @ wi
    # (a+ib)(c+id) = (ac - bd) + i(ad + bc)   -- VPU add/sub epilogue, f32.
    o_ref[...] = jnp.concatenate([rr - ii, ri + ir], axis=-1)


def _compl_mul1d_pallas(x_stacked, w_stacked, B, Cout, tm=64):
    """x_stacked: (M, 2B, Cin) f32; w_stacked: (M, Cin, 2Cout) f32.

    Returns (M, B, 2Cout) f32 with real part in the first Cout lanes and
    imaginary part in the last Cout lanes.
    """
    M, twoB, Cin = x_stacked.shape
    twoCout = w_stacked.shape[2]

    # Block TM modes per grid step; pad M so the grid divides evenly.
    TM = min(tm, M)
    n_blocks = pl.cdiv(M, TM)
    Mp = n_blocks * TM
    if Mp != M:
        x_stacked = jnp.pad(x_stacked, ((0, Mp - M), (0, 0), (0, 0)))
        w_stacked = jnp.pad(w_stacked, ((0, Mp - M), (0, 0), (0, 0)))

    out = pl.pallas_call(
        functools.partial(_compl_mul_kernel, B=B, Cout=Cout),
        out_shape=jax.ShapeDtypeStruct((Mp, B, twoCout), jnp.float32),
        grid_spec=pltpu.PrefetchScalarGridSpec(
            num_scalar_prefetch=0,
            grid=(n_blocks,),
            in_specs=[
                pl.BlockSpec((TM, twoB, Cin), lambda m: (m, 0, 0)),
                pl.BlockSpec((TM, Cin, twoCout), lambda m: (m, 0, 0)),
            ],
            out_specs=pl.BlockSpec((TM, B, twoCout), lambda m: (m, 0, 0)),
        ),
        compiler_params=pltpu.CompilerParams(
            dimension_semantics=("parallel",),
        ),
    )(x_stacked, w_stacked)
    return out[:M]


def spectral_conv1d(x, weights1_real, weights1_imag, modes1):
    """Forward pass of SpectralConv1d.

    x:             (B, Cin, N) float32
    weights1_*:    (Cin, Cout, modes1) float32 (real / imag parts of cfloat weights)
    returns:       (B, Cout, N) float32
    """
    B, Cin, N = x.shape
    Cout = weights1_real.shape[1]

    # TODO(synk): rfft/irfft have no Pallas equivalent; they stay in XLA.
    x_ft = jnp.fft.rfft(x, axis=-1)  # (B, Cin, N//2 + 1) complex64
    x_lo = x_ft[:, :, :modes1]

    # Stack real/imag along the batch-row axis, then go mode-major: (M, 2B, Cin).
    xr = jnp.real(x_lo).astype(jnp.float32)
    xi = jnp.imag(x_lo).astype(jnp.float32)
    x_stacked = jnp.transpose(jnp.concatenate([xr, xi], axis=0), (2, 0, 1))

    # Stack real/imag weights along the out-channel (lane) axis: (M, Cin, 2Cout).
    w_stacked = jnp.transpose(
        jnp.concatenate([weights1_real, weights1_imag], axis=1), (2, 0, 1)
    ).astype(jnp.float32)

    out = _compl_mul1d_pallas(x_stacked, w_stacked, B, Cout)  # (M, B, 2Cout)

    out_r = jnp.transpose(out[:, :, :Cout], (1, 2, 0))  # (B, Cout, M)
    out_i = jnp.transpose(out[:, :, Cout:], (1, 2, 0))
    out_lo = (out_r + 1j * out_i).astype(jnp.complex64)

    out_ft = jnp.zeros((B, Cout, N // 2 + 1), dtype=jnp.complex64)
    out_ft = out_ft.at[:, :, :modes1].set(out_lo)

    return jnp.fft.irfft(out_ft, n=N, axis=-1).astype(jnp.float32)


if __name__ == "__main__":
    # Module hyper-parameters (small shapes).
    in_channels, out_channels, modes1 = 4, 4, 5
    batch, n_spatial = 2, 16

    key = jax.random.PRNGKey(0)
    kx, kwr, kwi = jax.random.split(key, 3)

    # Deterministic parameter init mirroring
    #   scale * torch.rand(Cin, Cout, modes1, dtype=cfloat)
    scale = 1.0 / (in_channels * out_channels)
    weights1_real = scale * jax.random.uniform(
        kwr, (in_channels, out_channels, modes1), dtype=jnp.float32)
    weights1_imag = scale * jax.random.uniform(
        kwi, (in_channels, out_channels, modes1), dtype=jnp.float32)

    x = jax.random.normal(kx, (batch, in_channels, n_spatial), dtype=jnp.float32)

    out = spectral_conv1d(x, weights1_real, weights1_imag, modes1)
    out = jax.block_until_ready(out)
    assert out.shape == (batch, out_channels, n_spatial)

    # Pure-JAX reference for the whole forward (complex einsum in XLA).
    w_c = weights1_real + 1j * weights1_imag
    x_ft_ref = jnp.fft.rfft(x, axis=-1)
    out_lo_ref = jnp.einsum(
        "bix,iox->box", x_ft_ref[:, :, :modes1], w_c.astype(jnp.complex64))
    out_ft_ref = jnp.zeros((batch, out_channels, n_spatial // 2 + 1), jnp.complex64)
    out_ft_ref = out_ft_ref.at[:, :, :modes1].set(out_lo_ref)
    ref = jnp.fft.irfft(out_ft_ref, n=n_spatial, axis=-1)

    assert jnp.allclose(out, ref, atol=1e-5, rtol=1e-5), "mismatch vs reference"
    print("KERNEL_OK")
</pallas_src>

<mosaic_0001>
module attributes {stable_mosaic.version = 11 : i64} {
  func.func @_compl_mul_kernel(%arg0: i32, %arg1: memref<5x4x4xf32, #tpu.memory_space<vmem>>, %arg2: memref<5x4x8xf32, #tpu.memory_space<vmem>>, %arg3: memref<5x2x8xf32, #tpu.memory_space<vmem>>) attributes {dimension_semantics = [#tpu.dimension_semantics<parallel>], iteration_bounds = array<i64: 1>, scalar_prefetch = 0 : i64, scratch_operands = 0 : i64, tpu.core_type = #tpu.core_type<tc>, window_params = [{transform_indices = @transform_0, window_bounds = array<i64: 5, 4, 4>}, {transform_indices = @transform_1, window_bounds = array<i64: 5, 4, 8>}, {transform_indices = @transform_2, window_bounds = array<i64: 5, 2, 8>}]} {
    %c0 = arith.constant 0 : index
    %c0_0 = arith.constant 0 : index
    %c0_1 = arith.constant 0 : index
    %0 = vector.load %arg1[%c0, %c0_0, %c0_1] : memref<5x4x4xf32, #tpu.memory_space<vmem>>, vector<5x4x4xf32>
    %c0_2 = arith.constant 0 : index
    %c0_3 = arith.constant 0 : index
    %c0_4 = arith.constant 0 : index
    %1 = vector.load %arg2[%c0_2, %c0_3, %c0_4] : memref<5x4x8xf32, #tpu.memory_space<vmem>>, vector<5x4x8xf32>
    "tpu.trace_start"() <{level = 10 : i32, message = "mri,mic->mrc"}> : () -> ()
    %cst = arith.constant dense<0.000000e+00> : vector<5x4x8xf32>
    %2 = tpu.matmul %0, %1, %cst {dimension_numbers = #tpu.dot_dimension_numbers<[2], [1], [1], [2], [0, 0, 0, 1, 1, 2], [0], [0]>} : vector<5x4x4xf32>, vector<5x4x8xf32>, vector<5x4x8xf32> -> vector<5x4x8xf32>
    "tpu.trace_stop"() : () -> ()
    %3 = vector.extract_strided_slice %2 {offsets = [0, 0, 0], sizes = [5, 2, 4], strides = [1, 1, 1]} : vector<5x4x8xf32> to vector<5x2x4xf32>
    %4 = vector.extract_strided_slice %2 {offsets = [0, 0, 4], sizes = [5, 2, 4], strides = [1, 1, 1]} : vector<5x4x8xf32> to vector<5x2x4xf32>
    %5 = vector.extract_strided_slice %2 {offsets = [0, 2, 0], sizes = [5, 2, 4], strides = [1, 1, 1]} : vector<5x4x8xf32> to vector<5x2x4xf32>
    %6 = vector.extract_strided_slice %2 {offsets = [0, 2, 4], sizes = [5, 2, 4], strides = [1, 1, 1]} : vector<5x4x8xf32> to vector<5x2x4xf32>
    %7 = arith.subf %3, %6 : vector<5x2x4xf32>
    %8 = arith.addf %4, %5 : vector<5x2x4xf32>
    %9 = tpu.concatenate %7, %8 in 2 : vector<5x2x4xf32>, vector<5x2x4xf32> -> vector<5x2x8xf32>
    %c0_5 = arith.constant 0 : index
    %c0_6 = arith.constant 0 : index
    %c0_7 = arith.constant 0 : index
    %10 = vector.load %arg3[%c0_5, %c0_6, %c0_7] : memref<5x2x8xf32, #tpu.memory_space<vmem>>, vector<5x2x8xf32>
    tpu.vector_store %arg3[%c0_5, %c0_6, %c0_7], %9 {strides = array<i32>} : memref<5x2x8xf32, #tpu.memory_space<vmem>>, vector<5x2x8xf32>,
    return
  }
  func.func @transform_0(%arg0: i32) -> (i32, i32, i32) {
    %c0_i32 = arith.constant 0 : i32
    %c0_i32_0 = arith.constant 0 : i32
    %c0_i32_1 = arith.constant 0 : i32
    return %arg0, %c0_i32, %c0_i32_0 : i32, i32, i32
  }
  func.func @transform_1(%arg0: i32) -> (i32, i32, i32) {
    %c0_i32 = arith.constant 0 : i32
    %c0_i32_0 = arith.constant 0 : i32
    %c0_i32_1 = arith.constant 0 : i32
    return %arg0, %c0_i32, %c0_i32_0 : i32, i32, i32
  }
  func.func @transform_2(%arg0: i32) -> (i32, i32, i32) {
    %c0_i32 = arith.constant 0 : i32
    %c0_i32_0 = arith.constant 0 : i32
    %c0_i32_1 = arith.constant 0 : i32
    return %arg0, %c0_i32, %c0_i32_0 : i32, i32, i32
  }
}

</mosaic_0001>

<llo_original>
// kernel: tpu_custom_call.1
$region0: #{tpu_custom_call.1}
  #allocation0 [shape = 'u32[]', space=smem, size = 0x4, offset = 0x4, fixed_abs, tag = 'smem constant byte address 0x4 - core index']
  #allocation1 [shape = 'u32[144,128]{1,0:T(1,128)}', space=vmem, size = 0x12000, scoped, tag = 'internal scratch']
  %s0 = inlined_call_operand.vmem [shape: f32[5,4,4], index: 0, kind: input, shape index: {}]
  %s1 = inlined_call_operand.vmem [shape: f32[5,4,8], index: 1, kind: input, shape index: {}]
  %s2 = inlined_call_operand.hbm [shape: f32[5,2,8], index: 2, kind: output, shape index: {}]
  %s3 = sld [smem:[#allocation0]]
  $region18: #{tpu_custom_call.1} parent=0
    _
  %s5 = ssub.s32 1, %s3
  %s6 = scalar_select 0, %s5, %s3
  $region1: #{tpu_custom_call.1} parent=0
    #allocation2 [shape = 'u8[5120]{0}', space=vmem, size = 0x1400, scoped, tag = 'output window, operand 0, single buffered']
    #allocation3 [shape = 's32[1]{0}', space=sflag, size = 0x4, scoped, tag = 'scoped memory for tpu_custom_call.1']
    %7 = vsyncpa [#allocation3], 0
    // Predicated region
    $region2: #{tpu_custom_call.1} parent=1 // pred_check
      _
    $region3: #{tpu_custom_call.1} parent=1 // pred_check_branch
      %9 = sbr.rel (0) target = $region5
    $region4: #{tpu_custom_call.1} parent=1 // pred_region
      _
    $region5: #{tpu_custom_call.1} parent=1 // pred_fallthru
      _
    // Predicated region
    $region6: #{tpu_custom_call.1} parent=1 // pred_check
      _
    $region7: #{tpu_custom_call.1} parent=1 // pred_check_branch
      %11 = sbr.rel (0) target = $region9
    $region8: #{tpu_custom_call.1} parent=1 // pred_region
      _
    $region9: #{tpu_custom_call.1} parent=1 // pred_fallthru
      _
    %v12 = vld [vmem:[%s0] sm:$0xf]
    %v13 = vld [vmem:[%s0 + $0x4] sm:$0xf]
    %v14 = vld [vmem:[%s0 + $0x8] sm:$0xf]
    %v15 = vld [vmem:[%s0 + $0xc] sm:$0xf]
    %v16 = vld [vmem:[%s0 + $0x10] sm:$0xf]
    %v17 = vld [vmem:[%s1] sm:$0xf]
    %v18 = vld [vmem:[%s1 + $0x4] sm:$0xf]
    %v19 = vld [vmem:[%s1 + $0x8] sm:$0xf]
    %v20 = vld [vmem:[%s1 + $0xc] sm:$0xf]
    %v21 = vld [vmem:[%s1 + $0x10] sm:$0xf]
    %vm22 = vcmask 31744
    %v24 = vsel %vm22, %v12, 0
    %vm26 = vcmask 1043456
    %v28 = vsel %vm26, %v17, 0
    %30 = vmatprep.subr.mxu0 0.0
    %31 = vmatpush1.msra.mxu0 %v28
    %32 = vmatprep.subr.mxu0 0.0
    %33 = vmatpush1.msra.mxu0 0.0
    %34 = vmatprep.subr.mxu0 0.0
    %35 = vmatpush1.msra.mxu0 0.0
    %36 = vmatprep.subr.mxu0 0.0
    %37 = vmatpush1.msra.mxu0 0.0
    %38 = vmatprep.subr.mxu0 0.0
    %39 = vmatpush1.msra.mxu0 0.0
    %40 = vmatprep.subr.mxu0 0.0
    %41 = vmatpush1.msra.mxu0 0.0
    %42 = vmatprep.subr.mxu0 0.0
    %43 = vmatpush1.msra.mxu0 0.0
    %44 = vmatprep.subr.mxu0 0.0
    %45 = vmatpush1.msra.mxu0 0.0
    %46 = vmatprep.subr.mxu0 0.0
    %47 = vmatpush1.msra.mxu0 0.0
    %48 = vmatprep.subr.mxu0 0.0
    %49 = vmatpush1.msra.mxu0 0.0
    %50 = vmatprep.subr.mxu0 0.0
    %51 = vmatpush1.msra.mxu0 0.0
    %52 = vmatprep.subr.mxu0 0.0
    %53 = vmatpush1.msra.mxu0 0.0
    %54 = vmatprep.subr.mxu0 0.0
    %55 = vmatpush1.msra.mxu0 0.0
    %56 = vmatprep.subr.mxu0 0.0
    %57 = vmatpush1.msra.mxu0 0.0
    %58 = vmatprep.subr.mxu0 0.0
    %59 = vmatpush1.msra.mxu0 0.0
    %60 = vmatprep.subr.mxu0 0.0
    %61 = vmatpush1.msra.mxu0 0.0
    %62 = vmatprep.subr.mxu0 0.0
    %63 = vmatpush1.msra.mxu0 0.0
    %64 = vmatprep.subr.mxu0 0.0
    %65 = vmatpush1.msra.mxu0 0.0
    %66 = vmatprep.subr.mxu0 0.0
    %67 = vmatpush1.msra.mxu0 0.0
    %68 = vmatprep.subr.mxu0 0.0
    %69 = vmatpush1.msra.mxu0 0.0
    %70 = vmatprep.subr.mxu0 0.0
    %71 = vmatpush1.msra.mxu0 0.0
    %72 = vmatprep.subr.mxu0 0.0
    %73 = vmatpush1.msra.mxu0 0.0
    %74 = vmatprep.subr.mxu0 0.0
    %75 = vmatpush1.msra.mxu0 0.0
    %76 = vmatprep.subr.mxu0 0.0
    %77 = vmatpush1.msra.mxu0 0.0
    %78 = vmatprep.subr.mxu0 0.0
    %79 = vmatpush1.msra.mxu0 0.0
    %80 = vmatprep.subr.mxu0 0.0
    %81 = vmatpush1.msra.mxu0 0.0
    %82 = vmatprep.subr.mxu0 0.0
    %83 = vmatpush1.msra.mxu0 0.0
    %84 = vmatprep.subr.mxu0 0.0
    %85 = vmatpush1.msra.mxu0 0.0
    %86 = vmatprep.subr.mxu0 0.0
    %87 = vmatpush1.msra.mxu0 0.0
    %88 = vmatprep.subr.mxu0 0.0
    %89 = vmatpush1.msra.mxu0 0.0
    %90 = vmatprep.subr.mxu0 0.0
    %91 = vmatpush1.msra.mxu0 0.0
    %92 = vmatprep.subr.mxu0 0.0
    %93 = vmatpush1.msra.mxu0 0.0
    %94 = vmatprep.mubr.f32.mxu0 0.0
    %95 = vmatmul.mubr.f32.gmra.mrb[0].mxu0 %v24
    %v96 = vpop.f32.mrb[0].mxu0
    %v97 = vadd.f32 0.0, %v96
    %v98 = vpop.f32.mrb[0].mxu0
    %99 = vdwg.mxu0
    %v101 = vsel %vm22, %v13, 0
    %v104 = vsel %vm26, %v18, 0
    %106 = vmatprep.subr.mxu0 0.0
    %107 = vmatpush1.msra.mxu0 %v104
    %108 = vmatprep.subr.mxu0 0.0
    %109 = vmatpush1.msra.mxu0 0.0
    %110 = vmatprep.subr.mxu0 0.0
    %111 = vmatpush1.msra.mxu0 0.0
    %112 = vmatprep.subr.mxu0 0.0
    %113 = vmatpush1.msra.mxu0 0.0
    %114 = vmatprep.subr.mxu0 0.0
    %115 = vmatpush1.msra.mxu0 0.0
    %116 = vmatprep.subr.mxu0 0.0
    %117 = vmatpush1.msra.mxu0 0.0
    %118 = vmatprep.subr.mxu0 0.0
    %119 = vmatpush1.msra.mxu0 0.0
    %120 = vmatprep.subr.mxu0 0.0
    %121 = vmatpush1.msra.mxu0 0.0
    %122 = vmatprep.subr.mxu0 0.0
    %123 = vmatpush1.msra.mxu0 0.0
    %124 = vmatprep.subr.mxu0 0.0
    %125 = vmatpush1.msra.mxu0 0.0
    %126 = vmatprep.subr.mxu0 0.0
    %127 = vmatpush1.msra.mxu0 0.0
    %128 = vmatprep.subr.mxu0 0.0
    %129 = vmatpush1.msra.mxu0 0.0
    %130 = vmatprep.subr.mxu0 0.0
    %131 = vmatpush1.msra.mxu0 0.0
    %132 = vmatprep.subr.mxu0 0.0
    %133 = vmatpush1.msra.mxu0 0.0
    %134 = vmatprep.subr.mxu0 0.0
    %135 = vmatpush1.msra.mxu0 0.0
    %136 = vmatprep.subr.mxu0 0.0
    %137 = vmatpush1.msra.mxu0 0.0
    %138 = vmatprep.subr.mxu0 0.0
    %139 = vmatpush1.msra.mxu0 0.0
    %140 = vmatprep.subr.mxu0 0.0
    %141 = vmatpush1.msra.mxu0 0.0
    %142 = vmatprep.subr.mxu0 0.0
    %143 = vmatpush1.msra.mxu0 0.0
    %144 = vmatprep.subr.mxu0 0.0
    %145 = vmatpush1.msra.mxu0 0.0
    %146 = vmatprep.subr.mxu0 0.0
    %147 = vmatpush1.msra.mxu0 0.0
    %148 = vmatprep.subr.mxu0 0.0
    %149 = vmatpush1.msra.mxu0 0.0
    %150 = vmatprep.subr.mxu0 0.0
    %151 = vmatpush1.msra.mxu0 0.0
    %152 = vmatprep.subr.mxu0 0.0
    %153 = vmatpush1.msra.mxu0 0.0
    %154 = vmatprep.subr.mxu0 0.0
    %155 = vmatpush1.msra.mxu0 0.0
    %156 = vmatprep.subr.mxu0 0.0
    %157 = vmatpush1.msra.mxu0 0.0
    %158 = vmatprep.subr.mxu0 0.0
    %159 = vmatpush1.msra.mxu0 0.0
    %160 = vmatprep.subr.mxu0 0.0
    %161 = vmatpush1.msra.mxu0 0.0
    %162 = vmatprep.subr.mxu0 0.0
    %163 = vmatpush1.msra.mxu0 0.0
    %164 = vmatprep.subr.mxu0 0.0
    %165 = vmatpush1.msra.mxu0 0.0
    %166 = vmatprep.subr.mxu0 0.0
    %167 = vmatpush1.msra.mxu0 0.0
    %168 = vmatprep.subr.mxu0 0.0
    %169 = vmatpush1.msra.mxu0 0.0
    %170 = vmatprep.mubr.f32.mxu0 0.0
    %171 = vmatmul.mubr.f32.gmra.mrb[0].mxu0 %v101
    %v172 = vpop.f32.mrb[0].mxu0
    %v173 = vadd.f32 0.0, %v172
    %v174 = vpop.f32.mrb[0].mxu0
    %175 = vdwg.mxu0
    %v177 = vsel %vm22, %v14, 0
    %v180 = vsel %vm26, %v19, 0
    %182 = vmatprep.subr.mxu0 0.0
    %183 = vmatpush1.msra.mxu0 %v180
    %184 = vmatprep.subr.mxu0 0.0
    %185 = vmatpush1.msra.mxu0 0.0
    %186 = vmatprep.subr.mxu0 0.0
    %187 = vmatpush1.msra.mxu0 0.0
    %188 = vmatprep.subr.mxu0 0.0
    %189 = vmatpush1.msra.mxu0 0.0
    %190 = vmatprep.subr.mxu0 0.0
    %191 = vmatpush1.msra.mxu0 0.0
    %192 = vmatprep.subr.mxu0 0.0
    %193 = vmatpush1.msra.mxu0 0.0
    %194 = vmatprep.subr.mxu0 0.0
    %195 = vmatpush1.msra.mxu0 0.0
    %196 = vmatprep.subr.mxu0 0.0
    %197 = vmatpush1.msra.mxu0 0.0
    %198 = vmatprep.subr.mxu0 0.0
    %199 = vmatpush1.msra.mxu0 0.0
    %200 = vmatprep.subr.mxu0 0.0
    %201 = vmatpush1.msra.mxu0 0.0
    %202 = vmatprep.subr.mxu0 0.0
    %203 = vmatpush1.msra.mxu0 0.0
    %204 = vmatprep.subr.mxu0 0.0
    %205 = vmatpush1.msra.mxu0 0.0
    %206 = vmatprep.subr.mxu0 0.0
    %207 = vmatpush1.msra.mxu0 0.0
    %208 = vmatprep.subr.mxu0 0.0
    %209 = vmatpush1.msra.mxu0 0.0
    %210 = vmatprep.subr.mxu0 0.0
    %211 = vmatpush1.msra.mxu0 0.0
    %212 = vmatprep.subr.mxu0 0.0
    %213 = vmatpush1.msra.mxu0 0.0
    %214 = vmatprep.subr.mxu0 0.0
    %215 = vmatpush1.msra.mxu0 0.0
    %216 = vmatprep.subr.mxu0 0.0
    %217 = vmatpush1.msra.mxu0 0.0
    %218 = vmatprep.subr.mxu0 0.0
    %219 = vmatpush1.msra.mxu0 0.0
    %220 = vmatprep.subr.mxu0 0.0
    %221 = vmatpush1.msra.mxu0 0.0
    %222 = vmatprep.subr.mxu0 0.0
    %223 = vmatpush1.msra.mxu0 0.0
    %224 = vmatprep.subr.mxu0 0.0
    %225 = vmatpush1.msra.mxu0 0.0
    %226 = vmatprep.subr.mxu0 0.0
    %227 = vmatpush1.msra.mxu0 0.0
    %228 = vmatprep.subr.mxu0 0.0
    %229 = vmatpush1.msra.mxu0 0.0
    %230 = vmatprep.subr.mxu0 0.0
    %231 = vmatpush1.msra.mxu0 0.0
    %232 = vmatprep.subr.mxu0 0.0
    %233 = vmatpush1.msra.mxu0 0.0
    %234 = vmatprep.subr.mxu0 0.0
    %235 = vmatpush1.msra.mxu0 0.0
    %236 = vmatprep.subr.mxu0 0.0
    %237 = vmatpush1.msra.mxu0 0.0
    %238 = vmatprep.subr.mxu0 0.0
    %239 = vmatpush1.msra.mxu0 0.0
    %240 = vmatprep.subr.mxu0 0.0
    %241 = vmatpush1.msra.mxu0 0.0
    %242 = vmatprep.subr.mxu0 0.0
    %243 = vmatpush1.msra.mxu0 0.0
    %244 = vmatprep.subr.mxu0 0.0
    %245 = vmatpush1.msra.mxu0 0.0
    %246 = vmatprep.mubr.f32.mxu0 0.0
    %247 = vmatmul.mubr.f32.gmra.mrb[0].mxu0 %v177
    %v248 = vpop.f32.mrb[0].mxu0
    %v249 = vadd.f32 0.0, %v248
    %v250 = vpop.f32.mrb[0].mxu0
    %251 = vdwg.mxu0
    %v253 = vsel %vm22, %v15, 0
    %v256 = vsel %vm26, %v20, 0
    %258 = vmatprep.subr.mxu0 0.0
    %259 = vmatpush1.msra.mxu0 %v256
    %260 = vmatprep.subr.mxu0 0.0
    %261 = vmatpush1.msra.mxu0 0.0
    %262 = vmatprep.subr.mxu0 0.0
    %263 = vmatpush1.msra.mxu0 0.0
    %264 = vmatprep.subr.mxu0 0.0
    %265 = vmatpush1.msra.mxu0 0.0
    %266 = vmatprep.subr.mxu0 0.0
    %267 = vmatpush1.msra.mxu0 0.0
    %268 = vmatprep.subr.mxu0 0.0
    %269 = vmatpush1.msra.mxu0 0.0
    %270 = vmatprep.subr.mxu0 0.0
    %271 = vmatpush1.msra.mxu0 0.0
    %272 = vmatprep.subr.mxu0 0.0
    %273 = vmatpush1.msra.mxu0 0.0
    %274 = vmatprep.subr.mxu0 0.0
    %275 = vmatpush1.msra.mxu0 0.0
    %276 = vmatprep.subr.mxu0 0.0
    %277 = vmatpush1.msra.mxu0 0.0
    %278 = vmatprep.subr.mxu0 0.0
    %279 = vmatpush1.msra.mxu0 0.0
    %280 = vmatprep.subr.mxu0 0.0
    %281 = vmatpush1.msra.mxu0 0.0
    %282 = vmatprep.subr.mxu0 0.0
    %283 = vmatpush1.msra.mxu0 0.0
    %284 = vmatprep.subr.mxu0 0.0
    %285 = vmatpush1.msra.mxu0 0.0
    %286 = vmatprep.subr.mxu0 0.0
    %287 = vmatpush1.msra.mxu0 0.0
    %288 = vmatprep.subr.mxu0 0.0
    %289 = vmatpush1.msra.mxu0 0.0
    %290 = vmatprep.subr.mxu0 0.0
    %291 = vmatpush1.msra.mxu0 0.0
    %292 = vmatprep.subr.mxu0 0.0
    %293 = vmatpush1.msra.mxu0 0.0
    %294 = vmatprep.subr.mxu0 0.0
    %295 = vmatpush1.msra.mxu0 0.0
    %296 = vmatprep.subr.mxu0 0.0
    %297 = vmatpush1.msra.mxu0 0.0
    %298 = vmatprep.subr.mxu0 0.0
    %299 = vmatpush1.msra.mxu0 0.0
    %300 = vmatprep.subr.mxu0 0.0
    %301 = vmatpush1.msra.mxu0 0.0
    %302 = vmatprep.subr.mxu0 0.0
    %303 = vmatpush1.msra.mxu0 0.0
    %304 = vmatprep.subr.mxu0 0.0
    %305 = vmatpush1.msra.mxu0 0.0
    %306 = vmatprep.subr.mxu0 0.0
    %307 = vmatpush1.msra.mxu0 0.0
    %308 = vmatprep.subr.mxu0 0.0
    %309 = vmatpush1.msra.mxu0 0.0
    %310 = vmatprep.subr.mxu0 0.0
    %311 = vmatpush1.msra.mxu0 0.0
    %312 = vmatprep.subr.mxu0 0.0
    %313 = vmatpush1.msra.mxu0 0.0
    %314 = vmatprep.subr.mxu0 0.0
    %315 = vmatpush1.msra.mxu0 0.0
    %316 = vmatprep.subr.mxu0 0.0
    %317 = vmatpush1.msra.mxu0 0.0
    %318 = vmatprep.subr.mxu0 0.0
    %319 = vmatpush1.msra.mxu0 0.0
    %320 = vmatprep.subr.mxu0 0.0
    %321 = vmatpush1.msra.mxu0 0.0
    %322 = vmatprep.mubr.f32.mxu0 0.0
    %323 = vmatmul.mubr.f32.gmra.mrb[0].mxu0 %v253
    %v324 = vpop.f32.mrb[0].mxu0
    %v325 = vadd.f32 0.0, %v324
    %v326 = vpop.f32.mrb[0].mxu0
    %327 = vdwg.mxu0
    %v329 = vsel %vm22, %v16, 0
    %v332 = vsel %vm26, %v21, 0
    %334 = vmatprep.subr.mxu0 0.0
    %335 = vmatpush1.msra.mxu0 %v332
    %336 = vmatprep.subr.mxu0 0.0
    %337 = vmatpush1.msra.mxu0 0.0
    %338 = vmatprep.subr.mxu0 0.0
    %339 = vmatpush1.msra.mxu0 0.0
    %340 = vmatprep.subr.mxu0 0.0
    %341 = vmatpush1.msra.mxu0 0.0
    %342 = vmatprep.subr.mxu0 0.0
    %343 = vmatpush1.msra.mxu0 0.0
    %344 = vmatprep.subr.mxu0 0.0
    %345 = vmatpush1.msra.mxu0 0.0
    %346 = vmatprep.subr.mxu0 0.0
    %347 = vmatpush1.msra.mxu0 0.0
    %348 = vmatprep.subr.mxu0 0.0
    %349 = vmatpush1.msra.mxu0 0.0
    %350 = vmatprep.subr.mxu0 0.0
    %351 = vmatpush1.msra.mxu0 0.0
    %352 = vmatprep.subr.mxu0 0.0
    %353 = vmatpush1.msra.mxu0 0.0
    %354 = vmatprep.subr.mxu0 0.0
    %355 = vmatpush1.msra.mxu0 0.0
    %356 = vmatprep.subr.mxu0 0.0
    %357 = vmatpush1.msra.mxu0 0.0
    %358 = vmatprep.subr.mxu0 0.0
    %359 = vmatpush1.msra.mxu0 0.0
    %360 = vmatprep.subr.mxu0 0.0
    %361 = vmatpush1.msra.mxu0 0.0
    %362 = vmatprep.subr.mxu0 0.0
    %363 = vmatpush1.msra.mxu0 0.0
    %364 = vmatprep.subr.mxu0 0.0
    %365 = vmatpush1.msra.mxu0 0.0
    %366 = vmatprep.subr.mxu0 0.0
    %367 = vmatpush1.msra.mxu0 0.0
    %368 = vmatprep.subr.mxu0 0.0
    %369 = vmatpush1.msra.mxu0 0.0
    %370 = vmatprep.subr.mxu0 0.0
    %371 = vmatpush1.msra.mxu0 0.0
    %372 = vmatprep.subr.mxu0 0.0
    %373 = vmatpush1.msra.mxu0 0.0
    %374 = vmatprep.subr.mxu0 0.0
    %375 = vmatpush1.msra.mxu0 0.0
    %376 = vmatprep.subr.mxu0 0.0
    %377 = vmatpush1.msra.mxu0 0.0
    %378 = vmatprep.subr.mxu0 0.0
    %379 = vmatpush1.msra.mxu0 0.0
    %380 = vmatprep.subr.mxu0 0.0
    %381 = vmatpush1.msra.mxu0 0.0
    %382 = vmatprep.subr.mxu0 0.0
    %383 = vmatpush1.msra.mxu0 0.0
    %384 = vmatprep.subr.mxu0 0.0
    %385 = vmatpush1.msra.mxu0 0.0
    %386 = vmatprep.subr.mxu0 0.0
    %387 = vmatpush1.msra.mxu0 0.0
    %388 = vmatprep.subr.mxu0 0.0
    %389 = vmatpush1.msra.mxu0 0.0
    %390 = vmatprep.subr.mxu0 0.0
    %391 = vmatpush1.msra.mxu0 0.0
    %392 = vmatprep.subr.mxu0 0.0
    %393 = vmatpush1.msra.mxu0 0.0
    %394 = vmatprep.subr.mxu0 0.0
    %395 = vmatpush1.msra.mxu0 0.0
    %396 = vmatprep.subr.mxu0 0.0
    %397 = vmatpush1.msra.mxu0 0.0
    %398 = vmatprep.mubr.f32.mxu0 0.0
    %399 = vmatmul.mubr.f32.gmra.mrb[0].mxu0 %v329
    %v400 = vpop.f32.mrb[0].mxu0
    %v401 = vadd.f32 0.0, %v400
    %v402 = vpop.f32.mrb[0].mxu0
    %403 = vdwg.mxu0
    %v409 = vrot.slane %v97, 2
    %v410 = vrot.slane %v173, 2
    %v411 = vrot.slane %v249, 2
    %v412 = vrot.slane %v325, 2
    %v413 = vrot.slane %v401, 2
    %414 = vrot.lane.b32.xlu0 %v409, 124
    %v415 = vpop.permute.xlu0 %414
    %416 = vrot.lane.b32.xlu0 %v410, 124
    %v417 = vpop.permute.xlu0 %416
    %418 = vrot.lane.b32.xlu0 %v411, 124
    %v419 = vpop.permute.xlu0 %418
    %420 = vrot.lane.b32.xlu0 %v412, 124
    %v421 = vpop.permute.xlu0 %420
    %422 = vrot.lane.b32.xlu0 %v413, 124
    %v423 = vpop.permute.xlu0 %422
    %v429 = vsub.f32 %v97, %v415
    %v430 = vsub.f32 %v173, %v417
    %v431 = vsub.f32 %v249, %v419
    %v432 = vsub.f32 %v325, %v421
    %v433 = vsub.f32 %v401, %v423
    %434 = vrot.lane.b32.xlu0 %v409, 4
    %v435 = vpop.permute.xlu0 %434
    %436 = vrot.lane.b32.xlu0 %v410, 4
    %v437 = vpop.permute.xlu0 %436
    %438 = vrot.lane.b32.xlu0 %v411, 4
    %v439 = vpop.permute.xlu0 %438
    %440 = vrot.lane.b32.xlu0 %v412, 4
    %v441 = vpop.permute.xlu0 %440
    %442 = vrot.lane.b32.xlu0 %v413, 4
    %v443 = vpop.permute.xlu0 %442
    %v449 = vadd.f32 %v97, %v435
    %v450 = vadd.f32 %v173, %v437
    %v451 = vadd.f32 %v249, %v439
    %v452 = vadd.f32 %v325, %v441
    %v453 = vadd.f32 %v401, %v443
    %v454 = vsel %vm22, %v429, %v449
    %v455 = vsel %vm22, %v430, %v450
    %v456 = vsel %vm22, %v431, %v451
    %v457 = vsel %vm22, %v432, %v452
    %v458 = vsel %vm22, %v433, %v453
    %vm459 = vcmask 58368
    %460 = vst.msk [vmem:[#allocation2] sm:$0x3] %vm459, %v454
    %461 = vst.msk [vmem:[#allocation2 + $0x2] sm:$0x3] %vm459, %v455
    %462 = vst.msk [vmem:[#allocation2 + $0x4] sm:$0x3] %vm459, %v456
    %463 = vst.msk [vmem:[#allocation2 + $0x6] sm:$0x3] %vm459, %v457
    %464 = vst.msk [vmem:[#allocation2 + $0x8] sm:$0x3] %vm459, %v458
    // Predicated region
    $region10: #{tpu_custom_call.1} parent=1 // pred_check
      _
    $region11: #{tpu_custom_call.1} parent=1 // pred_check_branch
      %466 = sbr.rel (0) target = $region13
    $region12: #{tpu_custom_call.1} parent=1 // pred_region
      %s468 = ssub.s32 160, 160
      %469 = vsyncadd [#allocation3], %s468
      %s470 = sshll.u32 [#allocation2], 4
      %s471 = int_to_ptr.vmem [resolvable:$true] %s470
      %476 = dma.vmem_to_hbm [thread:$0]  %s471, 160, %s2, [#allocation3], 32, 32, 2
    $region13: #{tpu_custom_call.1} parent=1 // pred_fallthru
      _
    // Predicated region
    $region14: #{tpu_custom_call.1} parent=1 // pred_check
      _
    $region15: #{tpu_custom_call.1} parent=1 // pred_check_branch
      %478 = sbr.rel (0) target = $region17
    $region16: #{tpu_custom_call.1} parent=1 // pred_region
      %479 = dma.done [#allocation3], 160
    $region17: #{tpu_custom_call.1} parent=1 // pred_fallthru
      _
    %480 = vsyncpa [#allocation3], 1

</llo_original>
